<compile_context>
chip_gen: v7x
topology: tpu7x:2x2x1
jax: 0.10.0
libtpu: 0.0.40
codegen_flags: <defaults>
</compile_context>

<pallas_src>
import jax
import jax.numpy as jnp
from jax.experimental import pallas as pl
from jax.experimental.pallas import tpu as pltpu


def attention_kernel(enc_ref, dec_ref, cov_ref, w_ref, p_ref, out_ref):
    """Single-invocation kernel (no grid): processes every (b, t) row at once.

    enc_ref : (B*T, D)  encoder states, b-major rows (row r = b*T + t)
    dec_ref : (B, D)    decoder state per batch element
    cov_ref : (B*T, 1)  coverage, b-major rows
    w_ref   : (2D, D)   [enc_proj W^T ; dec_proj W^T], (in, out) layout
    p_ref   : (3, D)    [dec_proj bias ; w_c row ; v row]
    out_ref : (B*T, 1)  attention distribution (softmax over each batch's T rows)
    """
    f32 = jnp.float32
    TB, D = enc_ref.shape
    B = dec_ref.shape[0]
    T = TB // B

    we = w_ref[0:D, :]            # enc_proj weight^T   (D, D)
    wd = w_ref[D:2 * D, :]        # dec_proj weight^T   (D, D)
    bd = p_ref[0:1, :]            # dec_proj bias       (1, D)
    wc = p_ref[1:2, :]            # w_c weight row      (1, D)
    vr = p_ref[2:3, :]            # v weight row        (1, D)

    # enc_proj for every (b, t) row: one big-M MXU matmul.              (B*T, D)
    enc_feat = jnp.dot(enc_ref[...], we, preferred_element_type=f32)

    # dec_proj once for all B rows (tiny MXU matmul); broadcast over T on the VPU
    # below -- no selection matmul, no per-row M=1 matmuls.              (B, D)
    dec_feat = jnp.dot(dec_ref[...], wd, preferred_element_type=f32) + bd

    cov = cov_ref[...]                                                   # (B*T, 1)

    # Per-batch tail, static unroll over B (B is tiny; each slab is a contiguous,
    # sublane-aligned (T, D) slice so this is the same vector work as a 3-D batch).
    for b in range(B):
        lo, hi = b * T, (b + 1) * T
        s_b = jnp.tanh(enc_feat[lo:hi, :]              # (T, D)
                       + dec_feat[b:b + 1, :]          # (1, D) sublane broadcast
                       + cov[lo:hi, :] * wc)           # (T, 1)*(1, D) VPU outer product
        # v contraction: VPU multiply + XLU lane reduce (no N=1 MXU matmul).
        sc_b = jnp.sum(s_b * vr, axis=-1, keepdims=True)                 # (T, 1)
        # Softmax over T (sublanes of this batch slab).
        m_b = jnp.max(sc_b, axis=0, keepdims=True)                       # (1, 1)
        e_b = jnp.exp(sc_b - m_b)                                        # (T, 1)
        d_b = jnp.sum(e_b, axis=0, keepdims=True)                        # (1, 1)
        out_ref[lo:hi, :] = e_b * pl.reciprocal(d_b, approx=True)


def attention_forward(decoder_input, encoder_hidden, coverage, enc_pad_mask, params):
    """Pallas-backed equivalent of Attention.forward (USE_COVERAGE=True)."""
    # TODO(synk): enc_pad_mask is accepted but never applied -- this matches the
    # reference PyTorch forward exactly, but padded positions do receive attention mass.
    del enc_pad_mask
    T, B, D = encoder_hidden.shape
    TB = T * B

    # Layout plumbing (all tiny XLA ops):
    #   b-major encoder rows: (T, B, D) -> (B, T, D) -> (B*T, D)
    #   coverage is already b-major (B, T), so its flatten is free.
    enc2d = jnp.transpose(encoder_hidden, (1, 0, 2)).astype(jnp.float32).reshape(TB, D)
    dec2d = decoder_input.astype(jnp.float32).reshape(B, D)
    cov2d = coverage.astype(jnp.float32).reshape(TB, 1)

    # Pack parameters: 2 DMA descriptors instead of 5.
    w_stack = jnp.concatenate(
        [params["enc_proj_w"].T, params["dec_proj_w"].T], axis=0).astype(jnp.float32)  # (2D, D)
    p_stack = jnp.stack(
        [params["dec_proj_b"],            # dec_proj bias          (D,)
         params["w_c_w"][:, 0],           # Linear(1, D) weight    (D,)
         params["v_w"][0, :]],            # Linear(D, 1) weight    (D,)
        axis=0).astype(jnp.float32)                                                     # (3, D)

    cost = pl.CostEstimate(
        flops=2 * TB * D * D + 2 * B * D * D + 6 * TB * D + 4 * TB,
        transcendentals=TB * D + TB + B,
        bytes_accessed=4 * (TB * D + B * D + TB + 2 * D * D + 3 * D + TB),
    )

    out_col = pl.pallas_call(
        attention_kernel,
        out_shape=jax.ShapeDtypeStruct((TB, 1), jnp.float32),
        in_specs=[
            pl.BlockSpec(memory_space=pltpu.MemorySpace.VMEM),  # encoder rows (B*T, D)
            pl.BlockSpec(memory_space=pltpu.MemorySpace.VMEM),  # decoder rows (B, D)
            pl.BlockSpec(memory_space=pltpu.MemorySpace.VMEM),  # coverage col (B*T, 1)
            pl.BlockSpec(memory_space=pltpu.MemorySpace.VMEM),  # weight slab  (2D, D)
            pl.BlockSpec(memory_space=pltpu.MemorySpace.VMEM),  # param slab   (3, D)
        ],
        out_specs=pl.BlockSpec(memory_space=pltpu.MemorySpace.VMEM),
        cost_estimate=cost,
    )(enc2d, dec2d, cov2d, w_stack, p_stack)

    # Free reshape of 4*B*T bytes back to (B, T); rows are already b-major.
    return out_col.reshape(B, T)


def attention_ref(decoder_input, encoder_hidden, coverage, params):
    """Pure-JAX reference mirroring the PyTorch forward exactly (f32, highest precision)."""
    hp = jax.lax.Precision.HIGHEST
    enc_feature = jnp.einsum("tbd,ed->tbe", encoder_hidden, params["enc_proj_w"], precision=hp)
    enc_feature = jnp.transpose(enc_feature, (1, 0, 2))                          # (B, T, D)
    dec_feature = jnp.einsum("bsd,ed->bse", decoder_input, params["dec_proj_w"],
                             precision=hp) + params["dec_proj_b"]                # (B, 1, D)
    cov_feature = coverage[..., None] * params["w_c_w"][:, 0]                    # (B, T, D)
    scores = jnp.tanh(enc_feature + dec_feature + cov_feature)
    scores = jnp.einsum("btd,od->bto", scores, params["v_w"], precision=hp)[..., 0]  # (B, T)
    return jax.nn.softmax(scores, axis=-1)


if __name__ == "__main__":
    HIDDEN_DIM = 16
    D = 2 * HIDDEN_DIM          # 32
    B, T = 2, 8

    key = jax.random.PRNGKey(0)
    keys = jax.random.split(key, 8)

    # Deterministic synthetic parameters (PyTorch Linear weight layout: (out, in)).
    params = {
        "v_w": 0.1 * jax.random.normal(keys[0], (1, D), jnp.float32),
        "enc_proj_w": 0.1 * jax.random.normal(keys[1], (D, D), jnp.float32),
        "dec_proj_w": 0.1 * jax.random.normal(keys[2], (D, D), jnp.float32),
        "dec_proj_b": 0.1 * jax.random.normal(keys[3], (D,), jnp.float32),
        "w_c_w": 0.1 * jax.random.normal(keys[4], (D, 1), jnp.float32),   # Linear(1, D)
    }

    decoder_input = jax.random.normal(keys[5], (B, 1, D), jnp.float32)
    encoder_hidden = jax.random.normal(keys[6], (T, B, D), jnp.float32)
    coverage = jax.random.uniform(keys[7], (B, T), jnp.float32)
    enc_pad_mask = jnp.ones((B, T), jnp.float32)   # unused by the reference forward

    fwd = jax.jit(attention_forward)
    attn = jax.block_until_ready(fwd(decoder_input, encoder_hidden, coverage,
                                     enc_pad_mask, params))
    ref = attention_ref(decoder_input, encoder_hidden, coverage, params)

    assert attn.shape == (B, T)
    # Raw outputs: the only approximation is the EUP reciprocal in the softmax
    # denominator (~2^-12 relative error, identical factor within each row).
    assert jnp.allclose(attn, ref, atol=1e-3, rtol=1e-3), (attn, ref)
    # After exact row renormalization the approx-reciprocal factor cancels, so the
    # rest of the pipeline (MXU matmuls, tanh, exp) must match to tight tolerance.
    attn_renorm = attn / jnp.sum(attn, axis=-1, keepdims=True)
    assert jnp.allclose(attn_renorm, ref, atol=1e-5, rtol=1e-5), (attn_renorm, ref)
    assert jnp.allclose(jnp.sum(attn, axis=-1), jnp.ones((B,)), atol=2e-3)

    print("KERNEL_OK")
</pallas_src>

<mosaic_0001>
module attributes {stable_mosaic.version = 11 : i64} {
  func.func @attention_kernel(%arg0: memref<16x32xf32, #tpu.memory_space<vmem>>, %arg1: memref<2x32xf32, #tpu.memory_space<vmem>>, %arg2: memref<16x1xf32, #tpu.memory_space<vmem>>, %arg3: memref<64x32xf32, #tpu.memory_space<vmem>>, %arg4: memref<3x32xf32, #tpu.memory_space<vmem>>, %arg5: memref<16x1xf32, #tpu.memory_space<vmem>>) attributes {dimension_semantics = [], scalar_prefetch = 0 : i64, scratch_operands = 0 : i64, tpu.core_type = #tpu.core_type<tc>} {
    %c0 = arith.constant 0 : index
    %c0_0 = arith.constant 0 : index
    %0 = vector.load %arg3[%c0, %c0_0] : memref<64x32xf32, #tpu.memory_space<vmem>>, vector<32x32xf32>
    %c32 = arith.constant 32 : index
    %c0_1 = arith.constant 0 : index
    %1 = vector.load %arg3[%c32, %c0_1] : memref<64x32xf32, #tpu.memory_space<vmem>>, vector<32x32xf32>
    %c0_2 = arith.constant 0 : index
    %c0_3 = arith.constant 0 : index
    %2 = vector.load %arg4[%c0_2, %c0_3] : memref<3x32xf32, #tpu.memory_space<vmem>>, vector<1x32xf32>
    %c1 = arith.constant 1 : index
    %c0_4 = arith.constant 0 : index
    %3 = vector.load %arg4[%c1, %c0_4] : memref<3x32xf32, #tpu.memory_space<vmem>>, vector<1x32xf32>
    %c2 = arith.constant 2 : index
    %c0_5 = arith.constant 0 : index
    %4 = vector.load %arg4[%c2, %c0_5] : memref<3x32xf32, #tpu.memory_space<vmem>>, vector<1x32xf32>
    %c0_6 = arith.constant 0 : index
    %c0_7 = arith.constant 0 : index
    %5 = vector.load %arg0[%c0_6, %c0_7] : memref<16x32xf32, #tpu.memory_space<vmem>>, vector<16x32xf32>
    %cst = arith.constant dense<0.000000e+00> : vector<16x32xf32>
    %6 = tpu.matmul %5, %0, %cst {dimension_numbers = #tpu.dot_dimension_numbers<[1], [0], [0], [1], [0, 0, 1, 1], [], []>} : vector<16x32xf32>, vector<32x32xf32>, vector<16x32xf32> -> vector<16x32xf32>
    %c0_8 = arith.constant 0 : index
    %c0_9 = arith.constant 0 : index
    %7 = vector.load %arg1[%c0_8, %c0_9] : memref<2x32xf32, #tpu.memory_space<vmem>>, vector<2x32xf32>
    %cst_10 = arith.constant dense<0.000000e+00> : vector<2x32xf32>
    %8 = tpu.matmul %7, %1, %cst_10 {dimension_numbers = #tpu.dot_dimension_numbers<[1], [0], [0], [1], [0, 0, 1, 1], [], []>} : vector<2x32xf32>, vector<32x32xf32>, vector<2x32xf32> -> vector<2x32xf32>
    %9 = vector.broadcast %2 : vector<1x32xf32> to vector<2x32xf32>
    %10 = arith.addf %8, %9 : vector<2x32xf32>
    %c0_11 = arith.constant 0 : index
    %c0_12 = arith.constant 0 : index
    %11 = vector.load %arg2[%c0_11, %c0_12] : memref<16x1xf32, #tpu.memory_space<vmem>>, vector<16x1xf32>
    %12 = vector.extract_strided_slice %6 {offsets = [0, 0], sizes = [8, 32], strides = [1, 1]} : vector<16x32xf32> to vector<8x32xf32>
    %13 = vector.extract_strided_slice %10 {offsets = [0, 0], sizes = [1, 32], strides = [1, 1]} : vector<2x32xf32> to vector<1x32xf32>
    %14 = vector.broadcast %13 : vector<1x32xf32> to vector<8x32xf32>
    %15 = arith.addf %12, %14 : vector<8x32xf32>
    %16 = vector.extract_strided_slice %11 {offsets = [0, 0], sizes = [8, 1], strides = [1, 1]} : vector<16x1xf32> to vector<8x1xf32>
    %17 = vector.broadcast %16 : vector<8x1xf32> to vector<8x32xf32>
    %18 = vector.broadcast %3 : vector<1x32xf32> to vector<8x32xf32>
    %19 = arith.mulf %17, %18 : vector<8x32xf32>
    %20 = arith.addf %15, %19 : vector<8x32xf32>
    %21 = math.tanh %20 : vector<8x32xf32>
    %22 = vector.broadcast %4 : vector<1x32xf32> to vector<8x32xf32>
    %23 = arith.mulf %21, %22 : vector<8x32xf32>
    %cst_13 = arith.constant dense<0.000000e+00> : vector<8xf32>
    %24 = vector.multi_reduction <add>, %23, %cst_13 [1] : vector<8x32xf32> to vector<8xf32>
    %25 = vector.shape_cast %24 : vector<8xf32> to vector<8x1xf32>
    %cst_14 = arith.constant dense<0xFF800000> : vector<1xf32>
    %26 = vector.multi_reduction <maximumf>, %25, %cst_14 [0] : vector<8x1xf32> to vector<1xf32>
    %27 = vector.shape_cast %26 : vector<1xf32> to vector<1x1xf32>
    %28 = vector.broadcast %27 : vector<1x1xf32> to vector<8x1xf32>
    %29 = arith.subf %25, %28 : vector<8x1xf32>
    %30 = math.exp %29 : vector<8x1xf32>
    %cst_15 = arith.constant dense<0.000000e+00> : vector<1xf32>
    %31 = vector.multi_reduction <add>, %30, %cst_15 [0] : vector<8x1xf32> to vector<1xf32>
    %32 = vector.shape_cast %31 : vector<1xf32> to vector<1x1xf32>
    %33 = tpu.reciprocal %32 {approx = true} : vector<1x1xf32> -> vector<1x1xf32>
    %34 = vector.broadcast %33 : vector<1x1xf32> to vector<8x1xf32>
    %35 = arith.mulf %30, %34 : vector<8x1xf32>
    %c0_16 = arith.constant 0 : index
    %c0_17 = arith.constant 0 : index
    %36 = vector.load %arg5[%c0_16, %c0_17] : memref<16x1xf32, #tpu.memory_space<vmem>>, vector<8x1xf32>
    tpu.vector_store %arg5[%c0_16, %c0_17], %35 {strides = array<i32>} : memref<16x1xf32, #tpu.memory_space<vmem>>, vector<8x1xf32>,
    %37 = vector.extract_strided_slice %6 {offsets = [8, 0], sizes = [8, 32], strides = [1, 1]} : vector<16x32xf32> to vector<8x32xf32>
    %38 = vector.extract_strided_slice %10 {offsets = [1, 0], sizes = [1, 32], strides = [1, 1]} : vector<2x32xf32> to vector<1x32xf32>
    %39 = vector.broadcast %38 : vector<1x32xf32> to vector<8x32xf32>
    %40 = arith.addf %37, %39 : vector<8x32xf32>
    %41 = vector.extract_strided_slice %11 {offsets = [8, 0], sizes = [8, 1], strides = [1, 1]} : vector<16x1xf32> to vector<8x1xf32>
    %42 = vector.broadcast %41 : vector<8x1xf32> to vector<8x32xf32>
    %43 = vector.broadcast %3 : vector<1x32xf32> to vector<8x32xf32>
    %44 = arith.mulf %42, %43 : vector<8x32xf32>
    %45 = arith.addf %40, %44 : vector<8x32xf32>
    %46 = math.tanh %45 : vector<8x32xf32>
    %47 = vector.broadcast %4 : vector<1x32xf32> to vector<8x32xf32>
    %48 = arith.mulf %46, %47 : vector<8x32xf32>
    %cst_18 = arith.constant dense<0.000000e+00> : vector<8xf32>
    %49 = vector.multi_reduction <add>, %48, %cst_18 [1] : vector<8x32xf32> to vector<8xf32>
    %50 = vector.shape_cast %49 : vector<8xf32> to vector<8x1xf32>
    %cst_19 = arith.constant dense<0xFF800000> : vector<1xf32>
    %51 = vector.multi_reduction <maximumf>, %50, %cst_19 [0] : vector<8x1xf32> to vector<1xf32>
    %52 = vector.shape_cast %51 : vector<1xf32> to vector<1x1xf32>
    %53 = vector.broadcast %52 : vector<1x1xf32> to vector<8x1xf32>
    %54 = arith.subf %50, %53 : vector<8x1xf32>
    %55 = math.exp %54 : vector<8x1xf32>
    %cst_20 = arith.constant dense<0.000000e+00> : vector<1xf32>
    %56 = vector.multi_reduction <add>, %55, %cst_20 [0] : vector<8x1xf32> to vector<1xf32>
    %57 = vector.shape_cast %56 : vector<1xf32> to vector<1x1xf32>
    %58 = tpu.reciprocal %57 {approx = true} : vector<1x1xf32> -> vector<1x1xf32>
    %59 = vector.broadcast %58 : vector<1x1xf32> to vector<8x1xf32>
    %60 = arith.mulf %55, %59 : vector<8x1xf32>
    %c8 = arith.constant 8 : index
    %c0_21 = arith.constant 0 : index
    %61 = vector.load %arg5[%c8, %c0_21] : memref<16x1xf32, #tpu.memory_space<vmem>>, vector<8x1xf32>
    tpu.vector_store %arg5[%c8, %c0_21], %60 {strides = array<i32>} : memref<16x1xf32, #tpu.memory_space<vmem>>, vector<8x1xf32>,
    return
  }
}

</mosaic_0001>

<llo_original>
// kernel: attention_forward.1
$region0: #{attention_forward.1}
  #allocation0 [shape = 'u32[]', space=smem, size = 0x4, offset = 0x4, fixed_abs, tag = 'smem constant byte address 0x4 - core index']
  #allocation1 [shape = 'u32[144,128]{1,0:T(1,128)}', space=vmem, size = 0x12000, scoped, tag = 'internal scratch']
  %s0 = inlined_call_operand.vmem [shape: f32[16,32], index: 0, kind: input, shape index: {}]
  %s1 = inlined_call_operand.vmem [shape: f32[2,32], index: 1, kind: input, shape index: {}]
  %s2 = inlined_call_operand.vmem [shape: f32[16,1], index: 2, kind: input, shape index: {}]
  %s3 = inlined_call_operand.vmem [shape: f32[64,32], index: 3, kind: input, shape index: {}]
  %s4 = inlined_call_operand.vmem [shape: f32[3,32], index: 4, kind: input, shape index: {}]
  %s5 = inlined_call_operand.vmem [shape: f32[16,1], index: 5, kind: output, shape index: {}]
  %s6 = sld [smem:[#allocation0]]
  $region30: #{attention_forward.1} parent=0
    _
  %s8 = ssub.s32 1, %s6
  %s9 = scalar_select 0, %s8, %s6
  // Predicated region
  $region2: #{attention_forward.1} parent=0 // pred_check
    _
  $region3: #{attention_forward.1} parent=0 // pred_check_branch
    %11 = sbr.rel (0) target = $region5
  $region4: #{attention_forward.1} parent=0 // pred_region
    _
  $region5: #{attention_forward.1} parent=0 // pred_fallthru
    _
  // Predicated region
  $region6: #{attention_forward.1} parent=0 // pred_check
    _
  $region7: #{attention_forward.1} parent=0 // pred_check_branch
    %13 = sbr.rel (0) target = $region9
  $region8: #{attention_forward.1} parent=0 // pred_region
    _
  $region9: #{attention_forward.1} parent=0 // pred_fallthru
    _
  // Predicated region
  $region10: #{attention_forward.1} parent=0 // pred_check
    _
  $region11: #{attention_forward.1} parent=0 // pred_check_branch
    %15 = sbr.rel (0) target = $region13
  $region12: #{attention_forward.1} parent=0 // pred_region
    _
  $region13: #{attention_forward.1} parent=0 // pred_fallthru
    _
  // Predicated region
  $region14: #{attention_forward.1} parent=0 // pred_check
    _
  $region15: #{attention_forward.1} parent=0 // pred_check_branch
    %17 = sbr.rel (0) target = $region17
  $region16: #{attention_forward.1} parent=0 // pred_region
    _
  $region17: #{attention_forward.1} parent=0 // pred_fallthru
    _
  // Predicated region
  $region18: #{attention_forward.1} parent=0 // pred_check
    _
  $region19: #{attention_forward.1} parent=0 // pred_check_branch
    %19 = sbr.rel (0) target = $region21
  $region20: #{attention_forward.1} parent=0 // pred_region
    _
  $region21: #{attention_forward.1} parent=0 // pred_fallthru
    _
  %v20 = vld [vmem:[%s3] sm:$0xff]
  %v21 = vld [vmem:[%s3 + $0x8] sm:$0xff]
  %v22 = vld [vmem:[%s3 + $0x10] sm:$0xff]
  %v23 = vld [vmem:[%s3 + $0x18] sm:$0xff]
  %v24 = vld [vmem:[%s3 + $0x20] sm:$0xff]
  %v25 = vld [vmem:[%s3 + $0x28] sm:$0xff]
  %v26 = vld [vmem:[%s3 + $0x30] sm:$0xff]
  %v27 = vld [vmem:[%s3 + $0x38] sm:$0xff]
  %v28 = vld [vmem:[%s4] sm:$0x1]
  %v29 = vld [vmem:[%s4 + $0x1] sm:$0x1]
  %v30 = vld [vmem:[%s4 + $0x2] sm:$0x1]
  %v31 = vld [vmem:[%s0] sm:$0xff]
  %v32 = vld [vmem:[%s0 + $0x8] sm:$0xff]
  %vm33 = vcmask 261120
  %v35 = vsel %vm33, %v31, 0
  %v38 = vsel %vm33, %v32, 0
  %40 = vmatprep.subr.mxu0 0.0
  %41 = vmatpush1.msra.mxu0 %v20
  %42 = vmatprep.subr.mxu0 0.0
  %43 = vmatpush1.msra.mxu0 %v21
  %44 = vmatprep.subr.mxu0 0.0
  %45 = vmatpush1.msra.mxu0 %v22
  %46 = vmatprep.subr.mxu0 0.0
  %47 = vmatpush1.msra.mxu0 %v23
  %48 = vmatprep.subr.mxu0 0.0
  %49 = vmatpush1.msra.mxu0 0.0
  %50 = vmatprep.subr.mxu0 0.0
  %51 = vmatpush1.msra.mxu0 0.0
  %52 = vmatprep.subr.mxu0 0.0
  %53 = vmatpush1.msra.mxu0 0.0
  %54 = vmatprep.subr.mxu0 0.0
  %55 = vmatpush1.msra.mxu0 0.0
  %56 = vmatprep.subr.mxu0 0.0
  %57 = vmatpush1.msra.mxu0 0.0
  %58 = vmatprep.subr.mxu0 0.0
  %59 = vmatpush1.msra.mxu0 0.0
  %60 = vmatprep.subr.mxu0 0.0
  %61 = vmatpush1.msra.mxu0 0.0
  %62 = vmatprep.subr.mxu0 0.0
  %63 = vmatpush1.msra.mxu0 0.0
  %64 = vmatprep.subr.mxu0 0.0
  %65 = vmatpush1.msra.mxu0 0.0
  %66 = vmatprep.subr.mxu0 0.0
  %67 = vmatpush1.msra.mxu0 0.0
  %68 = vmatprep.subr.mxu0 0.0
  %69 = vmatpush1.msra.mxu0 0.0
  %70 = vmatprep.subr.mxu0 0.0
  %71 = vmatpush1.msra.mxu0 0.0
  %72 = vmatprep.subr.mxu0 0.0
  %73 = vmatpush1.msra.mxu0 0.0
  %74 = vmatprep.subr.mxu0 0.0
  %75 = vmatpush1.msra.mxu0 0.0
  %76 = vmatprep.subr.mxu0 0.0
  %77 = vmatpush1.msra.mxu0 0.0
  %78 = vmatprep.subr.mxu0 0.0
  %79 = vmatpush1.msra.mxu0 0.0
  %80 = vmatprep.subr.mxu0 0.0
  %81 = vmatpush1.msra.mxu0 0.0
  %82 = vmatprep.subr.mxu0 0.0
  %83 = vmatpush1.msra.mxu0 0.0
  %84 = vmatprep.subr.mxu0 0.0
  %85 = vmatpush1.msra.mxu0 0.0
  %86 = vmatprep.subr.mxu0 0.0
  %87 = vmatpush1.msra.mxu0 0.0
  %88 = vmatprep.subr.mxu0 0.0
  %89 = vmatpush1.msra.mxu0 0.0
  %90 = vmatprep.subr.mxu0 0.0
  %91 = vmatpush1.msra.mxu0 0.0
  %92 = vmatprep.subr.mxu0 0.0
  %93 = vmatpush1.msra.mxu0 0.0
  %94 = vmatprep.subr.mxu0 0.0
  %95 = vmatpush1.msra.mxu0 0.0
  %96 = vmatprep.subr.mxu0 0.0
  %97 = vmatpush1.msra.mxu0 0.0
  %98 = vmatprep.subr.mxu0 0.0
  %99 = vmatpush1.msra.mxu0 0.0
  %100 = vmatprep.subr.mxu0 0.0
  %101 = vmatpush1.msra.mxu0 0.0
  %102 = vmatprep.subr.mxu0 0.0
  %103 = vmatpush1.msra.mxu0 0.0
  %104 = vmatprep.mubr.f32.mxu0 0.0
  %105 = vmatmul.mubr.f32.gmra.mrb[0].mxu0 %v35
  %v106 = vpop.f32.mrb[0].mxu0
  %v107 = vadd.f32 0.0, %v106
  %v108 = vpop.f32.mrb[0].mxu0
  %109 = vmatprep.mubr.f32.mxu0 0.0
  %110 = vmatmul.mubr.f32.gmra.mrb[0].mxu0 %v38
  %v111 = vpop.f32.mrb[0].mxu0
  %v112 = vadd.f32 0.0, %v111
  %v113 = vpop.f32.mrb[0].mxu0
  %114 = vdwg.mxu0
  %v115 = vld [vmem:[%s1] sm:$0x3]
  %v116 = vlaneseq
  %v117 = vshrl.u32 %v116, 7
  %v118 = vsub.s32 0, %v117
  %v119 = vrot.slane %v28, %v118
  %v121 = vsel %vm33, %v115, 0
  %123 = vmatprep.subr.mxu0 0.0
  %124 = vmatpush1.msra.mxu0 %v24
  %125 = vmatprep.subr.mxu0 0.0
  %126 = vmatpush1.msra.mxu0 %v25
  %127 = vmatprep.subr.mxu0 0.0
  %128 = vmatpush1.msra.mxu0 %v26
  %129 = vmatprep.subr.mxu0 0.0
  %130 = vmatpush1.msra.mxu0 %v27
  %131 = vmatprep.subr.mxu0 0.0
  %132 = vmatpush1.msra.mxu0 0.0
  %133 = vmatprep.subr.mxu0 0.0
  %134 = vmatpush1.msra.mxu0 0.0
  %135 = vmatprep.subr.mxu0 0.0
  %136 = vmatpush1.msra.mxu0 0.0
  %137 = vmatprep.subr.mxu0 0.0
  %138 = vmatpush1.msra.mxu0 0.0
  %139 = vmatprep.subr.mxu0 0.0
  %140 = vmatpush1.msra.mxu0 0.0
  %141 = vmatprep.subr.mxu0 0.0
  %142 = vmatpush1.msra.mxu0 0.0
  %143 = vmatprep.subr.mxu0 0.0
  %144 = vmatpush1.msra.mxu0 0.0
  %145 = vmatprep.subr.mxu0 0.0
  %146 = vmatpush1.msra.mxu0 0.0
  %147 = vmatprep.subr.mxu0 0.0
  %148 = vmatpush1.msra.mxu0 0.0
  %149 = vmatprep.subr.mxu0 0.0
  %150 = vmatpush1.msra.mxu0 0.0
  %151 = vmatprep.subr.mxu0 0.0
  %152 = vmatpush1.msra.mxu0 0.0
  %153 = vmatprep.subr.mxu0 0.0
  %154 = vmatpush1.msra.mxu0 0.0
  %155 = vmatprep.subr.mxu0 0.0
  %156 = vmatpush1.msra.mxu0 0.0
  %157 = vmatprep.subr.mxu0 0.0
  %158 = vmatpush1.msra.mxu0 0.0
  %159 = vmatprep.subr.mxu0 0.0
  %160 = vmatpush1.msra.mxu0 0.0
  %161 = vmatprep.subr.mxu0 0.0
  %162 = vmatpush1.msra.mxu0 0.0
  %163 = vmatprep.subr.mxu0 0.0
  %164 = vmatpush1.msra.mxu0 0.0
  %165 = vmatprep.subr.mxu0 0.0
  %166 = vmatpush1.msra.mxu0 0.0
  %167 = vmatprep.subr.mxu0 0.0
  %168 = vmatpush1.msra.mxu0 0.0
  %169 = vmatprep.subr.mxu0 0.0
  %170 = vmatpush1.msra.mxu0 0.0
  %171 = vmatprep.subr.mxu0 0.0
  %172 = vmatpush1.msra.mxu0 0.0
  %173 = vmatprep.subr.mxu0 0.0
  %174 = vmatpush1.msra.mxu0 0.0
  %175 = vmatprep.subr.mxu0 0.0
  %176 = vmatpush1.msra.mxu0 0.0
  %177 = vmatprep.subr.mxu0 0.0
  %178 = vmatpush1.msra.mxu0 0.0
  %179 = vmatprep.subr.mxu0 0.0
  %180 = vmatpush1.msra.mxu0 0.0
  %181 = vmatprep.subr.mxu0 0.0
  %182 = vmatpush1.msra.mxu0 0.0
  %183 = vmatprep.subr.mxu0 0.0
  %184 = vmatpush1.msra.mxu0 0.0
  %185 = vmatprep.subr.mxu0 0.0
  %186 = vmatpush1.msra.mxu0 0.0
  %187 = vmatprep.mubr.f32.mxu0 0.0
  %188 = vmatmul.mubr.f32.gmra.mrb[0].mxu0 %v121
  %v189 = vpop.f32.mrb[0].mxu0
  %v190 = vadd.f32 %v119, %v189
  %v191 = vpop.f32.mrb[0].mxu0
  %192 = vdwg.mxu0
  %v193 = vld [vmem:[%s2] sm:$0xff]
  %v194 = vld [vmem:[%s2 + $0x8] sm:$0xff]
  %v195 = vlaneseq
  %v196 = vshrl.u32 %v195, 7
  %v197 = vsub.s32 0, %v196
  %v198 = vrot.slane %v190, %v197
  %v199 = vadd.f32 %v107, %v198
  %201 = vset.pattern.permute.xlu0 0
  %202 = vperm.xlu0 %201, %v193
  %v203 = vpop.permute.xlu0 %202
  %v205 = vlaneseq
  %v206 = vshrl.u32 %v205, 7
  %v207 = vsub.s32 0, %v206
  %v208 = vrot.slane %v29, %v207
  %v209 = vmul.f32 %v203, %v208
  %v210 = vadd.f32 %v199, %v209
  %v211 = vtanh.pop %v210
  %v212 = vlaneseq
  %v213 = vshrl.u32 %v212, 7
  %v214 = vsub.s32 0, %v213
  %v215 = vrot.slane %v30, %v214
  %v216 = vmul.f32 %v211, %v215
  %v217 = vsel %vm33, %v216, 0.0
  %218 = vadd.xlane.f32.xlu0 %v217
  %v219 = vpop.xlane.xlu0 %218
  %v220 = vrot.slane %v219, 4
  %v221 = vmax.f32 %v219, %v220
  %v222 = vrot.slane %v221, 2
  %v223 = vmax.f32 %v221, %v222
  %v224 = vrot.slane %v223, 1
  %v225 = vmax.f32 %v223, %v224
  %v226 = vsub.f32 %v219, %v225
  %v227 = vmul.f32 %v226, 1.442695
  %v228 = vpow.pop %v227
  %v229 = vrot.slane %v228, 4
  %v230 = vadd.f32 %v228, %v229
  %v231 = vrot.slane %v230, 2
  %v232 = vadd.f32 %v230, %v231
  %v233 = vrot.slane %v232, 1
  %v234 = vadd.f32 %v232, %v233
  %v235 = vrcp.pop %v234
  %v236 = vmul.f32 %v228, %v235
  %vm237 = vcmask 7168
  %238 = vst.msk [vmem:[%s5] sm:$0xff] %vm237, %v236
  %v239 = vlaneseq
  %v240 = vshrl.u32 %v239, 7
  %v241 = vsub.s32 1, %v240
  %v242 = vrot.slane %v190, %v241
  %v243 = vadd.f32 %v112, %v242
  %245 = vset.pattern.permute.xlu0 0
  %246 = vperm.xlu0 %245, %v194
  %v247 = vpop.permute.xlu0 %246
  %v249 = vmul.f32 %v247, %v208
  %v250 = vadd.f32 %v243, %v249
  %v251 = vtanh.pop %v250
  %v252 = vmul.f32 %v251, %v215
  %v253 = vsel %vm33, %v252, 0.0
  %254 = vadd.xlane.f32.xlu0 %v253
  %v255 = vpop.xlane.xlu0 %254
  %v256 = vrot.slane %v255, 4
  %v257 = vmax.f32 %v255, %v256
  %v258 = vrot.slane %v257, 2
  %v259 = vmax.f32 %v257, %v258
  %v260 = vrot.slane %v259, 1
  %v261 = vmax.f32 %v259, %v260
  %v262 = vsub.f32 %v255, %v261
  %v263 = vmul.f32 %v262, 1.442695
  %v264 = vpow.pop %v263
  %v265 = vrot.slane %v264, 4
  %v266 = vadd.f32 %v264, %v265
  %v267 = vrot.slane %v266, 2
  %v268 = vadd.f32 %v266, %v267
  %v269 = vrot.slane %v268, 1
  %v270 = vadd.f32 %v268, %v269
  %v271 = vrcp.pop %v270
  %v272 = vmul.f32 %v264, %v271
  %273 = vst.msk [vmem:[%s5 + $0x8] sm:$0xff] %vm237, %v272
  // Predicated region
  $region22: #{attention_forward.1} parent=0 // pred_check
    _
  $region23: #{attention_forward.1} parent=0 // pred_check_branch
    %275 = sbr.rel (0) target = $region25
  $region24: #{attention_forward.1} parent=0 // pred_region
    _
  $region25: #{attention_forward.1} parent=0 // pred_fallthru
    _
  // Predicated region
  $region26: #{attention_forward.1} parent=0 // pred_check
    _
  $region27: #{attention_forward.1} parent=0 // pred_check_branch
    %277 = sbr.rel (0) target = $region29
  $region28: #{attention_forward.1} parent=0 // pred_region
    _
  $region29: #{attention_forward.1} parent=0 // pred_fallthru
    _

</llo_original>
